<compile_context>
chip_gen: v5e
topology: v5e:2x2
jax: 0.10.0
libtpu: 0.0.40
codegen_flags: <defaults>
</compile_context>

<pallas_src>
import jax
import jax.numpy as jnp
from jax.experimental import pallas as pl
from jax.experimental.pallas import tpu as pltpu

BN_EPS = 1e-5
_ALIGN = 256                        # MXU N-width on v6e/v7x (128 suffices on v5e)
_X_VMEM_BUDGET = 24 * 1024 * 1024   # double-buffered x-block budget, v7x-safe


def _round_up(a, b):
    return (a + b - 1) // b * b


def mlp_kernel(x_ref,
               w1_ref, b1_ref,
               w2_ref, b2_ref,
               w3_ref, b3_ref,
               w4_ref, b4_ref,
               o_ref):
    """Feature-major MLP on one (TILE, F) tile of rows -> one lane-dense (1, TILE) row."""
    xt = x_ref[...].T                                                     # (F, T): one XLU transpose/tile

    # Linear(F,64) -> ReLU            (BN1 folded forward into w2/b2 in the wrapper)
    h = jnp.dot(w1_ref[...], xt, preferred_element_type=jnp.float32) + b1_ref[...]
    h = jnp.maximum(h, 0.0)                                               # (64, T)

    # Linear(64,32) [BN1 pre-folded] -> ReLU      (BN2 folded forward into w3/b3)
    h = jnp.dot(w2_ref[...], h, preferred_element_type=jnp.float32) + b2_ref[...]
    h = jnp.maximum(h, 0.0)                                               # (32, T)

    # Linear(32,16) [BN2 pre-folded] -> ReLU
    h = jnp.dot(w3_ref[...], h, preferred_element_type=jnp.float32) + b3_ref[...]
    h = jnp.maximum(h, 0.0)                                               # (16, T)

    # Dropout(0.3)/Dropout(0.2): identity in eval mode.
    # TODO(synk): training-mode Dropout / batch-statistics BatchNorm not implemented.

    # Linear(16,1): (1,16)@(16,T) -> lane-dense (1,T), unmasked full-lane stores.
    out = jnp.dot(w4_ref[...], h, preferred_element_type=jnp.float32) + b4_ref[0]
    o_ref[...] = out.astype(o_ref.dtype)


def fold_bn_feature_major(params):
    """Fold eval-mode BatchNorm (running stats) exactly into the *next* Linear and
    return feature-major (transposed) weights + column biases."""
    (w1, b1, g1, be1, m1, v1,
     w2, b2, g2, be2, m2, v2,
     w3, b3, w4, b4) = params
    s1 = g1 * jax.lax.rsqrt(v1 + BN_EPS)          # (1, 64)
    t1 = be1 - m1 * s1                            # (1, 64)
    s2 = g2 * jax.lax.rsqrt(v2 + BN_EPS)          # (1, 32)
    t2 = be2 - m2 * s2                            # (1, 32)
    w2f = s1.reshape(-1, 1) * w2                  # (64, 32)
    b2f = t1 @ w2 + b2                            # (1, 32)
    w3f = s2.reshape(-1, 1) * w3                  # (32, 16)
    b3f = t2 @ w3 + b3                            # (1, 16)
    return (w1.T,  b1.reshape(-1, 1),             # (64,F),  (64,1)
            w2f.T, b2f.reshape(-1, 1),            # (32,64), (32,1)
            w3f.T, b3f.reshape(-1, 1),            # (16,32), (16,1)
            w4.reshape(1, -1), b4.reshape(-1))    # (1,16),  (1,) scalar -> SMEM


def _choose_tile(n, f, max_tile_rows):
    f_lanes = max(_round_up(f, 128), 128)                 # F lane-pads to >=128 in VMEM
    vmem_tile = (_X_VMEM_BUDGET // (2 * f_lanes * 4)) // _ALIGN * _ALIGN
    tile = min(max_tile_rows, max(vmem_tile, _ALIGN), _round_up(n, _ALIGN))
    if n >= 2 * _ALIGN:                                   # keep grid >= 2 for v7x megacore
        tile = min(tile, _round_up(pl.cdiv(n, 2), _ALIGN))
    return max(_ALIGN, tile // _ALIGN * _ALIGN)


def mlp_forward(x, params, *, max_tile_rows=2048):
    n, f = x.shape
    w1t, b1c, w2t, b2c, w3t, b3c, w4r, b4s = fold_bn_feature_major(params)

    tile = _choose_tile(n, f, max_tile_rows)
    grid = pl.cdiv(n, tile)            # no jnp.pad copy: ragged last block is masked

    weight_elems = (f * 64 + 64) + (64 * 32 + 32) + (32 * 16 + 16) + (16 + 1)
    cost = pl.CostEstimate(
        flops=2 * n * (f * 64 + 64 * 32 + 32 * 16 + 16),
        transcendentals=0,
        bytes_accessed=4 * (n * f + n + weight_elems),
    )

    const = lambda i: (0, 0)
    out = pl.pallas_call(
        mlp_kernel,
        out_shape=jax.ShapeDtypeStruct((1, n), jnp.float32),
        grid=(grid,),
        in_specs=[
            pl.BlockSpec((tile, f), lambda i: (i, 0)),          # x: streamed + pipelined
            pl.BlockSpec((64, f), const),                       # weights/biases: constant
            pl.BlockSpec((64, 1), const),                       #   index maps -> DMA'd once,
            pl.BlockSpec((32, 64), const),                      #   stay VMEM-resident
            pl.BlockSpec((32, 1), const),
            pl.BlockSpec((16, 32), const),
            pl.BlockSpec((16, 1), const),
            pl.BlockSpec((1, 16), const),
            pl.BlockSpec(memory_space=pltpu.MemorySpace.SMEM),  # scalar final bias
        ],
        out_specs=pl.BlockSpec((1, tile), lambda i: (0, i)),    # lane-dense output row
        compiler_params=pltpu.CompilerParams(
            dimension_semantics=("parallel",),      # shard batch tiles across TCs (v7x)
            vmem_limit_bytes=32 * 1024 * 1024,      # tile cap keeps x-block <= 24 MiB
        ),
        cost_estimate=cost,
    )(x, w1t, b1c, w2t, b2c, w3t, b3c, w4r, b4s)

    return out.reshape(n, 1)


def init_params(key, input_size):
    """Deterministic PyTorch-style init (uniform +-1/sqrt(fan_in)); fresh BN stats."""
    dims = [(input_size, 64), (64, 32), (32, 16), (16, 1)]
    keys = jax.random.split(key, 2 * len(dims))
    ws, bs = [], []
    for i, (fan_in, fan_out) in enumerate(dims):
        bound = 1.0 / jnp.sqrt(fan_in)
        w = jax.random.uniform(keys[2 * i], (fan_in, fan_out),
                               minval=-bound, maxval=bound, dtype=jnp.float32)
        b = jax.random.uniform(keys[2 * i + 1], (1, fan_out),
                               minval=-bound, maxval=bound, dtype=jnp.float32)
        ws.append(w)
        bs.append(b)

    g1 = jnp.ones((1, 64), jnp.float32)
    be1 = jnp.zeros((1, 64), jnp.float32)
    m1 = jnp.zeros((1, 64), jnp.float32)
    v1 = jnp.ones((1, 64), jnp.float32)
    g2 = jnp.ones((1, 32), jnp.float32)
    be2 = jnp.zeros((1, 32), jnp.float32)
    m2 = jnp.zeros((1, 32), jnp.float32)
    v2 = jnp.ones((1, 32), jnp.float32)

    return (ws[0], bs[0], g1, be1, m1, v1,
            ws[1], bs[1], g2, be2, m2, v2,
            ws[2], bs[2],
            ws[3], bs[3])


def mlp_reference(x, p):
    (w1, b1, g1, be1, m1, v1,
     w2, b2, g2, be2, m2, v2,
     w3, b3, w4, b4) = p
    h = jnp.maximum(x @ w1 + b1, 0.0)
    h = (h - m1) * jax.lax.rsqrt(v1 + BN_EPS) * g1 + be1
    h = jnp.maximum(h @ w2 + b2, 0.0)
    h = (h - m2) * jax.lax.rsqrt(v2 + BN_EPS) * g2 + be2
    h = jnp.maximum(h @ w3 + b3, 0.0)
    return h @ w4 + b4


if __name__ == "__main__":
    key = jax.random.PRNGKey(0)
    k_x, k_p = jax.random.split(key)

    batch, input_size = 200, 32   # non-multiple of the tile: exercises the ragged last block
    x = jax.random.normal(k_x, (batch, input_size), dtype=jnp.float32)
    params = init_params(k_p, input_size)

    out = mlp_forward(x, params)
    out = jax.block_until_ready(out)

    ref = mlp_reference(x, params)
    assert out.shape == (batch, 1)
    assert jnp.allclose(out, ref, atol=1e-4, rtol=1e-4), \
        f"max abs err {jnp.max(jnp.abs(out - ref))}"

    print("KERNEL_OK")
</pallas_src>

<mosaic_0001>
module attributes {stable_mosaic.version = 11 : i64} {
  func.func @mlp_kernel(%arg0: i32, %arg1: memref<256x32xf32, #tpu.memory_space<vmem>>, %arg2: memref<64x32xf32, #tpu.memory_space<vmem>>, %arg3: memref<64x1xf32, #tpu.memory_space<vmem>>, %arg4: memref<32x64xf32, #tpu.memory_space<vmem>>, %arg5: memref<32x1xf32, #tpu.memory_space<vmem>>, %arg6: memref<16x32xf32, #tpu.memory_space<vmem>>, %arg7: memref<16x1xf32, #tpu.memory_space<vmem>>, %arg8: memref<1x16xf32, #tpu.memory_space<vmem>>, %arg9: memref<1xf32, #tpu.memory_space<smem>>, %arg10: memref<1x256xf32, #tpu.memory_space<vmem>>) attributes {dimension_semantics = [#tpu.dimension_semantics<parallel>], iteration_bounds = array<i64: 1>, scalar_prefetch = 0 : i64, scratch_operands = 0 : i64, tpu.core_type = #tpu.core_type<tc>, window_params = [{transform_indices = @transform_0, window_bounds = array<i64: 256, 32>}, {pipeline_mode = #tpu.pipeline_mode<synchronous>, transform_indices = @transform_1, window_bounds = array<i64: 64, 32>}, {pipeline_mode = #tpu.pipeline_mode<synchronous>, transform_indices = @transform_2, window_bounds = array<i64: 64, 1>}, {pipeline_mode = #tpu.pipeline_mode<synchronous>, transform_indices = @transform_3, window_bounds = array<i64: 32, 64>}, {pipeline_mode = #tpu.pipeline_mode<synchronous>, transform_indices = @transform_4, window_bounds = array<i64: 32, 1>}, {pipeline_mode = #tpu.pipeline_mode<synchronous>, transform_indices = @transform_5, window_bounds = array<i64: 16, 32>}, {pipeline_mode = #tpu.pipeline_mode<synchronous>, transform_indices = @transform_6, window_bounds = array<i64: 16, 1>}, {pipeline_mode = #tpu.pipeline_mode<synchronous>, transform_indices = @transform_7, window_bounds = array<i64: 1, 16>}, {transform_indices = @transform_8, window_bounds = array<i64: 1>}, {transform_indices = @transform_9, window_bounds = array<i64: 1, 256>}]} {
    %c0 = arith.constant 0 : index
    %c0_0 = arith.constant 0 : index
    %0 = vector.load %arg1[%c0, %c0_0] : memref<256x32xf32, #tpu.memory_space<vmem>>, vector<256x32xf32>
    %1 = tpu.transpose %0, [1, 0] : vector<256x32xf32> -> vector<32x256xf32>
    %c0_1 = arith.constant 0 : index
    %c0_2 = arith.constant 0 : index
    %2 = vector.load %arg2[%c0_1, %c0_2] : memref<64x32xf32, #tpu.memory_space<vmem>>, vector<64x32xf32>
    %cst = arith.constant dense<0.000000e+00> : vector<64x256xf32>
    %3 = tpu.matmul %2, %1, %cst {dimension_numbers = #tpu.dot_dimension_numbers<[1], [0], [0], [1], [0, 0, 1, 1], [], []>} : vector<64x32xf32>, vector<32x256xf32>, vector<64x256xf32> -> vector<64x256xf32>
    %c0_3 = arith.constant 0 : index
    %c0_4 = arith.constant 0 : index
    %4 = vector.load %arg3[%c0_3, %c0_4] : memref<64x1xf32, #tpu.memory_space<vmem>>, vector<64x1xf32>
    %5 = vector.broadcast %4 : vector<64x1xf32> to vector<64x256xf32>
    %6 = arith.addf %3, %5 : vector<64x256xf32>
    %cst_5 = arith.constant 0.000000e+00 : f32
    %7 = vector.broadcast %cst_5 : f32 to vector<64x256xf32>
    %8 = arith.maximumf %6, %7 : vector<64x256xf32>
    %c0_6 = arith.constant 0 : index
    %c0_7 = arith.constant 0 : index
    %9 = vector.load %arg4[%c0_6, %c0_7] : memref<32x64xf32, #tpu.memory_space<vmem>>, vector<32x64xf32>
    %cst_8 = arith.constant dense<0.000000e+00> : vector<32x256xf32>
    %10 = tpu.matmul %9, %8, %cst_8 {dimension_numbers = #tpu.dot_dimension_numbers<[1], [0], [0], [1], [0, 0, 1, 1], [], []>} : vector<32x64xf32>, vector<64x256xf32>, vector<32x256xf32> -> vector<32x256xf32>
    %c0_9 = arith.constant 0 : index
    %c0_10 = arith.constant 0 : index
    %11 = vector.load %arg5[%c0_9, %c0_10] : memref<32x1xf32, #tpu.memory_space<vmem>>, vector<32x1xf32>
    %12 = vector.broadcast %11 : vector<32x1xf32> to vector<32x256xf32>
    %13 = arith.addf %10, %12 : vector<32x256xf32>
    %cst_11 = arith.constant 0.000000e+00 : f32
    %14 = vector.broadcast %cst_11 : f32 to vector<32x256xf32>
    %15 = arith.maximumf %13, %14 : vector<32x256xf32>
    %c0_12 = arith.constant 0 : index
    %c0_13 = arith.constant 0 : index
    %16 = vector.load %arg6[%c0_12, %c0_13] : memref<16x32xf32, #tpu.memory_space<vmem>>, vector<16x32xf32>
    %cst_14 = arith.constant dense<0.000000e+00> : vector<16x256xf32>
    %17 = tpu.matmul %16, %15, %cst_14 {dimension_numbers = #tpu.dot_dimension_numbers<[1], [0], [0], [1], [0, 0, 1, 1], [], []>} : vector<16x32xf32>, vector<32x256xf32>, vector<16x256xf32> -> vector<16x256xf32>
    %c0_15 = arith.constant 0 : index
    %c0_16 = arith.constant 0 : index
    %18 = vector.load %arg7[%c0_15, %c0_16] : memref<16x1xf32, #tpu.memory_space<vmem>>, vector<16x1xf32>
    %19 = vector.broadcast %18 : vector<16x1xf32> to vector<16x256xf32>
    %20 = arith.addf %17, %19 : vector<16x256xf32>
    %cst_17 = arith.constant 0.000000e+00 : f32
    %21 = vector.broadcast %cst_17 : f32 to vector<16x256xf32>
    %22 = arith.maximumf %20, %21 : vector<16x256xf32>
    %c0_18 = arith.constant 0 : index
    %c0_19 = arith.constant 0 : index
    %23 = vector.load %arg8[%c0_18, %c0_19] : memref<1x16xf32, #tpu.memory_space<vmem>>, vector<1x16xf32>
    %cst_20 = arith.constant dense<0.000000e+00> : vector<1x256xf32>
    %24 = tpu.matmul %23, %22, %cst_20 {dimension_numbers = #tpu.dot_dimension_numbers<[1], [0], [0], [1], [0, 0, 1, 1], [], []>} : vector<1x16xf32>, vector<16x256xf32>, vector<1x256xf32> -> vector<1x256xf32>
    %c0_21 = arith.constant 0 : index
    %25 = memref.load %arg9[%c0_21] : memref<1xf32, #tpu.memory_space<smem>>
    %26 = vector.broadcast %25 : f32 to vector<1x256xf32>
    %27 = arith.addf %24, %26 : vector<1x256xf32>
    %c0_22 = arith.constant 0 : index
    %c0_23 = arith.constant 0 : index
    %28 = vector.load %arg10[%c0_22, %c0_23] : memref<1x256xf32, #tpu.memory_space<vmem>>, vector<1x256xf32>
    tpu.vector_store %arg10[%c0_22, %c0_23], %27 {strides = array<i32>} : memref<1x256xf32, #tpu.memory_space<vmem>>, vector<1x256xf32>,
    return
  }
  func.func @transform_0(%arg0: i32) -> (i32, i32) {
    %c0_i32 = arith.constant 0 : i32
    %c0_i32_0 = arith.constant 0 : i32
    return %arg0, %c0_i32 : i32, i32
  }
  func.func @transform_1(%arg0: i32) -> (i32, i32) {
    %c0_i32 = arith.constant 0 : i32
    %c0_i32_0 = arith.constant 0 : i32
    %c0_i32_1 = arith.constant 0 : i32
    return %c0_i32, %c0_i32_0 : i32, i32
  }
  func.func @transform_2(%arg0: i32) -> (i32, i32) {
    %c0_i32 = arith.constant 0 : i32
    %c0_i32_0 = arith.constant 0 : i32
    %c0_i32_1 = arith.constant 0 : i32
    return %c0_i32, %c0_i32_0 : i32, i32
  }
  func.func @transform_3(%arg0: i32) -> (i32, i32) {
    %c0_i32 = arith.constant 0 : i32
    %c0_i32_0 = arith.constant 0 : i32
    %c0_i32_1 = arith.constant 0 : i32
    return %c0_i32, %c0_i32_0 : i32, i32
  }
  func.func @transform_4(%arg0: i32) -> (i32, i32) {
    %c0_i32 = arith.constant 0 : i32
    %c0_i32_0 = arith.constant 0 : i32
    %c0_i32_1 = arith.constant 0 : i32
    return %c0_i32, %c0_i32_0 : i32, i32
  }
  func.func @transform_5(%arg0: i32) -> (i32, i32) {
    %c0_i32 = arith.constant 0 : i32
    %c0_i32_0 = arith.constant 0 : i32
    %c0_i32_1 = arith.constant 0 : i32
    return %c0_i32, %c0_i32_0 : i32, i32
  }
  func.func @transform_6(%arg0: i32) -> (i32, i32) {
    %c0_i32 = arith.constant 0 : i32
    %c0_i32_0 = arith.constant 0 : i32
    %c0_i32_1 = arith.constant 0 : i32
    return %c0_i32, %c0_i32_0 : i32, i32
  }
  func.func @transform_7(%arg0: i32) -> (i32, i32) {
    %c0_i32 = arith.constant 0 : i32
    %c0_i32_0 = arith.constant 0 : i32
    %c0_i32_1 = arith.constant 0 : i32
    return %c0_i32, %c0_i32_0 : i32, i32
  }
  func.func @transform_8(%arg0: i32) -> i32 {
    %c0_i32 = arith.constant 0 : i32
    %c0_i32_0 = arith.constant 0 : i32
    return %c0_i32 : i32
  }
  func.func @transform_9(%arg0: i32) -> (i32, i32) {
    %c0_i32 = arith.constant 0 : i32
    %c0_i32_0 = arith.constant 0 : i32
    return %c0_i32, %arg0 : i32, i32
  }
}

</mosaic_0001>

<llo_original>
// kernel: tpu_custom_call.1
$region0: #{tpu_custom_call.1}
  #allocation0 [shape = 'u32[]', space=smem, size = 0x4, offset = 0x4, fixed_abs, tag = 'smem constant byte address 0x4 - core index']
  #allocation1 [shape = 'u32[72,128]{1,0:T(1,128)}', space=vmem, size = 0x9000, scoped, tag = 'internal scratch']
  #allocation2 [shape = 'f32[1]{0:T(128)S(6)}', space=smem, size = 0x200, scoped, tag = 'scoped memory for tpu_custom_call.1']
  %s0 = inlined_call_operand.vmem [shape: f32[200,32], index: 0, kind: input, shape index: {}]
  %s1 = inlined_call_operand.vmem [shape: f32[64,32], index: 1, kind: input, shape index: {}]
  %s2 = inlined_call_operand.vmem [shape: f32[64,1], index: 2, kind: input, shape index: {}]
  %s3 = inlined_call_operand.vmem [shape: f32[32,64], index: 3, kind: input, shape index: {}]
  %s4 = inlined_call_operand.vmem [shape: f32[32,1], index: 4, kind: input, shape index: {}]
  %s5 = inlined_call_operand.vmem [shape: f32[16,32], index: 5, kind: input, shape index: {}]
  %s6 = inlined_call_operand.vmem [shape: f32[16,1], index: 6, kind: input, shape index: {}]
  %s7 = inlined_call_operand.vmem [shape: f32[1,16], index: 7, kind: input, shape index: {}]
  %s8 = inlined_call_operand.<no memory space> [shape: f32[1], index: 8, kind: input, shape index: {}]
  %s9 = inlined_call_operand.hbm [shape: f32[1,200], index: 9, kind: output, shape index: {}]
  %s10 = sld [smem:[#allocation0]]
  $region46: #{tpu_custom_call.1} parent=0
    _
  %s12 = ssub.s32 1, %s10
  %s13 = scalar_select 0, %s12, %s10
  %14 = sst [smem:[#allocation2]] %s8
  $region1: #{tpu_custom_call.1} parent=0
    #allocation3 [shape = 'u8[1024]{0}', space=vmem, size = 0x400, scoped, tag = 'output window, operand 0, single buffered']
    #allocation4 [shape = 's32[1]{0}', space=sflag, size = 0x4, scoped, tag = 'scoped memory for tpu_custom_call.1']
    %15 = vsyncpa [#allocation4], 0
    // Predicated region
    $region2: #{tpu_custom_call.1} parent=1 // pred_check
      _
    $region3: #{tpu_custom_call.1} parent=1 // pred_check_branch
      %17 = sbr.rel (0) target = $region5
    $region4: #{tpu_custom_call.1} parent=1 // pred_region
      _
    $region5: #{tpu_custom_call.1} parent=1 // pred_fallthru
      _
    // Predicated region
    $region6: #{tpu_custom_call.1} parent=1 // pred_check
      _
    $region7: #{tpu_custom_call.1} parent=1 // pred_check_branch
      %19 = sbr.rel (0) target = $region9
    $region8: #{tpu_custom_call.1} parent=1 // pred_region
      _
    $region9: #{tpu_custom_call.1} parent=1 // pred_fallthru
      _
    // Predicated region
    $region10: #{tpu_custom_call.1} parent=1 // pred_check
      _
    $region11: #{tpu_custom_call.1} parent=1 // pred_check_branch
      %21 = sbr.rel (0) target = $region13
    $region12: #{tpu_custom_call.1} parent=1 // pred_region
      _
    $region13: #{tpu_custom_call.1} parent=1 // pred_fallthru
      _
    // Predicated region
    $region14: #{tpu_custom_call.1} parent=1 // pred_check
      _
    $region15: #{tpu_custom_call.1} parent=1 // pred_check_branch
      %23 = sbr.rel (0) target = $region17
    $region16: #{tpu_custom_call.1} parent=1 // pred_region
      _
    $region17: #{tpu_custom_call.1} parent=1 // pred_fallthru
      _
    // Predicated region
    $region18: #{tpu_custom_call.1} parent=1 // pred_check
      _
    $region19: #{tpu_custom_call.1} parent=1 // pred_check_branch
      %25 = sbr.rel (0) target = $region21
    $region20: #{tpu_custom_call.1} parent=1 // pred_region
      _
    $region21: #{tpu_custom_call.1} parent=1 // pred_fallthru
      _
    // Predicated region
    $region22: #{tpu_custom_call.1} parent=1 // pred_check
      _
    $region23: #{tpu_custom_call.1} parent=1 // pred_check_branch
      %27 = sbr.rel (0) target = $region25
    $region24: #{tpu_custom_call.1} parent=1 // pred_region
      _
    $region25: #{tpu_custom_call.1} parent=1 // pred_fallthru
      _
    // Predicated region
    $region26: #{tpu_custom_call.1} parent=1 // pred_check
      _
    $region27: #{tpu_custom_call.1} parent=1 // pred_check_branch
      %29 = sbr.rel (0) target = $region29
    $region28: #{tpu_custom_call.1} parent=1 // pred_region
      _
    $region29: #{tpu_custom_call.1} parent=1 // pred_fallthru
      _
    // Predicated region
    $region30: #{tpu_custom_call.1} parent=1 // pred_check
      _
    $region31: #{tpu_custom_call.1} parent=1 // pred_check_branch
      %31 = sbr.rel (0) target = $region33
    $region32: #{tpu_custom_call.1} parent=1 // pred_region
      _
    $region33: #{tpu_custom_call.1} parent=1 // pred_fallthru
      _
    // Predicated region
    $region34: #{tpu_custom_call.1} parent=1 // pred_check
      _
    $region35: #{tpu_custom_call.1} parent=1 // pred_check_branch
      %33 = sbr.rel (0) target = $region37
    $region36: #{tpu_custom_call.1} parent=1 // pred_region
      _
    $region37: #{tpu_custom_call.1} parent=1 // pred_fallthru
      _
    %v34 = vld [vmem:[%s0] sm:$0xff]
    %v35 = vld [vmem:[%s0 + $0x8] sm:$0xff]
    %v36 = vld [vmem:[%s0 + $0x10] sm:$0xff]
    %v37 = vld [vmem:[%s0 + $0x18] sm:$0xff]
    %v38 = vld [vmem:[%s0 + $0x20] sm:$0xff]
    %v39 = vld [vmem:[%s0 + $0x28] sm:$0xff]
    %v40 = vld [vmem:[%s0 + $0x30] sm:$0xff]
    %v41 = vld [vmem:[%s0 + $0x38] sm:$0xff]
    %v42 = vld [vmem:[%s0 + $0x40] sm:$0xff]
    %v43 = vld [vmem:[%s0 + $0x48] sm:$0xff]
    %v44 = vld [vmem:[%s0 + $0x50] sm:$0xff]
    %v45 = vld [vmem:[%s0 + $0x58] sm:$0xff]
    %v46 = vld [vmem:[%s0 + $0x60] sm:$0xff]
    %v47 = vld [vmem:[%s0 + $0x68] sm:$0xff]
    %v48 = vld [vmem:[%s0 + $0x70] sm:$0xff]
    %v49 = vld [vmem:[%s0 + $0x78] sm:$0xff]
    %v50 = vld [vmem:[%s0 + $0x80] sm:$0xff]
    %v51 = vld [vmem:[%s0 + $0x88] sm:$0xff]
    %v52 = vld [vmem:[%s0 + $0x90] sm:$0xff]
    %v53 = vld [vmem:[%s0 + $0x98] sm:$0xff]
    %v54 = vld [vmem:[%s0 + $0xa0] sm:$0xff]
    %v55 = vld [vmem:[%s0 + $0xa8] sm:$0xff]
    %v56 = vld [vmem:[%s0 + $0xb0] sm:$0xff]
    %v57 = vld [vmem:[%s0 + $0xb8] sm:$0xff]
    %v58 = vld [vmem:[%s0 + $0xc0] sm:$0xff]
    %v59 = vld [vmem:[%s0 + $0xc8] sm:$0xff]
    %v60 = vld [vmem:[%s0 + $0xd0] sm:$0xff]
    %v61 = vld [vmem:[%s0 + $0xd8] sm:$0xff]
    %v62 = vld [vmem:[%s0 + $0xe0] sm:$0xff]
    %v63 = vld [vmem:[%s0 + $0xe8] sm:$0xff]
    %v64 = vld [vmem:[%s0 + $0xf0] sm:$0xff]
    %v65 = vld [vmem:[%s0 + $0xf8] sm:$0xff]
    %v66 = vld [vmem:[%s1] sm:$0xff]
    %v67 = vld [vmem:[%s1 + $0x8] sm:$0xff]
    %v68 = vld [vmem:[%s1 + $0x10] sm:$0xff]
    %v69 = vld [vmem:[%s1 + $0x18] sm:$0xff]
    %v70 = vld [vmem:[%s1 + $0x20] sm:$0xff]
    %v71 = vld [vmem:[%s1 + $0x28] sm:$0xff]
    %v72 = vld [vmem:[%s1 + $0x30] sm:$0xff]
    %v73 = vld [vmem:[%s1 + $0x38] sm:$0xff]
    %v74 = vld [vmem:[%s2] sm:$0xff]
    %v75 = vld [vmem:[%s2 + $0x8] sm:$0xff]
    %v76 = vld [vmem:[%s2 + $0x10] sm:$0xff]
    %v77 = vld [vmem:[%s2 + $0x18] sm:$0xff]
    %v78 = vld [vmem:[%s2 + $0x20] sm:$0xff]
    %v79 = vld [vmem:[%s2 + $0x28] sm:$0xff]
    %v80 = vld [vmem:[%s2 + $0x30] sm:$0xff]
    %v81 = vld [vmem:[%s2 + $0x38] sm:$0xff]
    %83 = vset.pattern.permute.xlu0 0
    %84 = vperm.xlu0 %83, %v74
    %v85 = vpop.permute.xlu0 %84
    %88 = vset.pattern.permute.xlu0 0
    %89 = vperm.xlu0 %88, %v75
    %v90 = vpop.permute.xlu0 %89
    %93 = vset.pattern.permute.xlu0 0
    %94 = vperm.xlu0 %93, %v76
    %v95 = vpop.permute.xlu0 %94
    %98 = vset.pattern.permute.xlu0 0
    %99 = vperm.xlu0 %98, %v77
    %v100 = vpop.permute.xlu0 %99
    %103 = vset.pattern.permute.xlu0 0
    %104 = vperm.xlu0 %103, %v78
    %v105 = vpop.permute.xlu0 %104
    %108 = vset.pattern.permute.xlu0 0
    %109 = vperm.xlu0 %108, %v79
    %v110 = vpop.permute.xlu0 %109
    %113 = vset.pattern.permute.xlu0 0
    %114 = vperm.xlu0 %113, %v80
    %v115 = vpop.permute.xlu0 %114
    %118 = vset.pattern.permute.xlu0 0
    %119 = vperm.xlu0 %118, %v81
    %v120 = vpop.permute.xlu0 %119
    %vm122 = vcmask 261120
    %v124 = vsel %vm122, %v66, 0
    %v127 = vsel %vm122, %v67, 0
    %v130 = vsel %vm122, %v68, 0
    %v133 = vsel %vm122, %v69, 0
    %v136 = vsel %vm122, %v70, 0
    %v139 = vsel %vm122, %v71, 0
    %v142 = vsel %vm122, %v72, 0
    %v145 = vsel %vm122, %v73, 0
    %v148 = vsel %vm122, %v34, 0
    %v151 = vsel %vm122, %v35, 0
    %v154 = vsel %vm122, %v36, 0
    %v157 = vsel %vm122, %v37, 0
    %v160 = vsel %vm122, %v38, 0
    %v163 = vsel %vm122, %v39, 0
    %v166 = vsel %vm122, %v40, 0
    %v169 = vsel %vm122, %v41, 0
    %v172 = vsel %vm122, %v42, 0
    %v175 = vsel %vm122, %v43, 0
    %v178 = vsel %vm122, %v44, 0
    %v181 = vsel %vm122, %v45, 0
    %v184 = vsel %vm122, %v46, 0
    %v187 = vsel %vm122, %v47, 0
    %v190 = vsel %vm122, %v48, 0
    %v193 = vsel %vm122, %v49, 0
    %v196 = vsel %vm122, %v50, 0
    %v199 = vsel %vm122, %v51, 0
    %v202 = vsel %vm122, %v52, 0
    %v205 = vsel %vm122, %v53, 0
    %v208 = vsel %vm122, %v54, 0
    %v211 = vsel %vm122, %v55, 0
    %v214 = vsel %vm122, %v56, 0
    %v217 = vsel %vm122, %v57, 0
    %v220 = vsel %vm122, %v58, 0
    %v223 = vsel %vm122, %v59, 0
    %v226 = vsel %vm122, %v60, 0
    %v229 = vsel %vm122, %v61, 0
    %v232 = vsel %vm122, %v62, 0
    %v235 = vsel %vm122, %v63, 0
    %v238 = vsel %vm122, %v64, 0
    %v241 = vsel %vm122, %v65, 0
    %243 = vmatpush.xpose.msra.mxu0 %v193
    %244 = vmatpush.xpose.msra.mxu0 %v190
    %245 = vmatpush.xpose.msra.mxu0 %v187
    %246 = vmatpush.xpose.msra.mxu0 %v184
    %247 = vmatpush.xpose.msra.mxu0 %v181
    %248 = vmatpush.xpose.msra.mxu0 %v178
    %249 = vmatpush.xpose.msra.mxu0 %v175
    %250 = vmatpush.xpose.msra.mxu0 %v172
    %251 = vmatpush.xpose.msra.mxu0 %v169
    %252 = vmatpush.xpose.msra.mxu0 %v166
    %253 = vmatpush.xpose.msra.mxu0 %v163
    %254 = vmatpush.xpose.msra.mxu0 %v160
    %255 = vmatpush.xpose.msra.mxu0 %v157
    %256 = vmatpush.xpose.msra.mxu0 %v154
    %257 = vmatpush.xpose.msra.mxu0 %v151
    %258 = vmatpush.xpose.msra.mxu0 %v148
    %259 = vmatmul.f32.gmra.mxu0 %v124
    %v260 = vpop.f32.mrf.mxu0
    %v261 = vadd.f32 %v85, %v260
    %262 = vmatmul.f32.gmra.mxu0 %v127
    %v263 = vpop.f32.mrf.mxu0
    %v264 = vadd.f32 %v90, %v263
    %265 = vmatmul.f32.gmra.mxu0 %v130
    %v266 = vpop.f32.mrf.mxu0
    %v267 = vadd.f32 %v95, %v266
    %268 = vmatmul.f32.gmra.mxu0 %v133
    %v269 = vpop.f32.mrf.mxu0
    %v270 = vadd.f32 %v100, %v269
    %271 = vmatmul.f32.gmra.mxu0 %v136
    %v272 = vpop.f32.mrf.mxu0
    %v273 = vadd.f32 %v105, %v272
    %274 = vmatmul.f32.gmra.mxu0 %v139
    %v275 = vpop.f32.mrf.mxu0
    %v276 = vadd.f32 %v110, %v275
    %277 = vmatmul.f32.gmra.mxu0 %v142
    %v278 = vpop.f32.mrf.mxu0
    %v279 = vadd.f32 %v115, %v278
    %280 = vmatmul.f32.gmra.mxu0 %v145
    %v281 = vpop.f32.mrf.mxu0
    %v282 = vadd.f32 %v120, %v281
    %283 = vdwg.mxu0
    %284 = vmatpush.xpose.msra.mxu0 %v241
    %285 = vmatpush.xpose.msra.mxu0 %v238
    %286 = vmatpush.xpose.msra.mxu0 %v235
    %287 = vmatpush.xpose.msra.mxu0 %v232
    %288 = vmatpush.xpose.msra.mxu0 %v229
    %289 = vmatpush.xpose.msra.mxu0 %v226
    %290 = vmatpush.xpose.msra.mxu0 %v223
    %291 = vmatpush.xpose.msra.mxu0 %v220
    %292 = vmatpush.xpose.msra.mxu0 %v217
    %293 = vmatpush.xpose.msra.mxu0 %v214
    %294 = vmatpush.xpose.msra.mxu0 %v211
    %295 = vmatpush.xpose.msra.mxu0 %v208
    %296 = vmatpush.xpose.msra.mxu0 %v205
    %297 = vmatpush.xpose.msra.mxu0 %v202
    %298 = vmatpush.xpose.msra.mxu0 %v199
    %299 = vmatpush.xpose.msra.mxu0 %v196
    %300 = vmatmul.f32.gmra.mxu0 %v124
    %v301 = vpop.f32.mrf.mxu0
    %v302 = vadd.f32 %v85, %v301
    %303 = vmatmul.f32.gmra.mxu0 %v127
    %v304 = vpop.f32.mrf.mxu0
    %v305 = vadd.f32 %v90, %v304
    %306 = vmatmul.f32.gmra.mxu0 %v130
    %v307 = vpop.f32.mrf.mxu0
    %v308 = vadd.f32 %v95, %v307
    %309 = vmatmul.f32.gmra.mxu0 %v133
    %v310 = vpop.f32.mrf.mxu0
    %v311 = vadd.f32 %v100, %v310
    %312 = vmatmul.f32.gmra.mxu0 %v136
    %v313 = vpop.f32.mrf.mxu0
    %v314 = vadd.f32 %v105, %v313
    %315 = vmatmul.f32.gmra.mxu0 %v139
    %v316 = vpop.f32.mrf.mxu0
    %v317 = vadd.f32 %v110, %v316
    %318 = vmatmul.f32.gmra.mxu0 %v142
    %v319 = vpop.f32.mrf.mxu0
    %v320 = vadd.f32 %v115, %v319
    %321 = vmatmul.f32.gmra.mxu0 %v145
    %v322 = vpop.f32.mrf.mxu0
    %v323 = vadd.f32 %v120, %v322
    %324 = vdwg.mxu0
    %v325 = vmax.f32 %v261, 0.0
    %v326 = vmax.f32 %v302, 0.0
    %v327 = vmax.f32 %v264, 0.0
    %v328 = vmax.f32 %v305, 0.0
    %v329 = vmax.f32 %v267, 0.0
    %v330 = vmax.f32 %v308, 0.0
    %v331 = vmax.f32 %v270, 0.0
    %v332 = vmax.f32 %v311, 0.0
    %v333 = vmax.f32 %v273, 0.0
    %v334 = vmax.f32 %v314, 0.0
    %v335 = vmax.f32 %v276, 0.0
    %v336 = vmax.f32 %v317, 0.0
    %v337 = vmax.f32 %v279, 0.0
    %v338 = vmax.f32 %v320, 0.0
    %v339 = vmax.f32 %v282, 0.0
    %v340 = vmax.f32 %v323, 0.0
    %v341 = vld [vmem:[%s3] sm:$0xff]
    %v342 = vld [vmem:[%s3 + $0x8] sm:$0xff]
    %v343 = vld [vmem:[%s3 + $0x10] sm:$0xff]
    %v344 = vld [vmem:[%s3 + $0x18] sm:$0xff]
    %v345 = vld [vmem:[%s4] sm:$0xff]
    %v346 = vld [vmem:[%s4 + $0x8] sm:$0xff]
    %v347 = vld [vmem:[%s4 + $0x10] sm:$0xff]
    %v348 = vld [vmem:[%s4 + $0x18] sm:$0xff]
    %350 = vset.pattern.permute.xlu0 0
    %351 = vperm.xlu0 %350, %v345
    %v352 = vpop.permute.xlu0 %351
    %355 = vset.pattern.permute.xlu0 0
    %356 = vperm.xlu0 %355, %v346
    %v357 = vpop.permute.xlu0 %356
    %360 = vset.pattern.permute.xlu0 0
    %361 = vperm.xlu0 %360, %v347
    %v362 = vpop.permute.xlu0 %361
    %365 = vset.pattern.permute.xlu0 0
    %366 = vperm.xlu0 %365, %v348
    %v367 = vpop.permute.xlu0 %366
    %vm369 = vcmask 523264
    %v371 = vsel %vm369, %v341, 0
    %v374 = vsel %vm369, %v342, 0
    %v377 = vsel %vm369, %v343, 0
    %v380 = vsel %vm369, %v344, 0
    %382 = vmatpush.msra.mxu0 0.0
    %383 = vmatpush.msra.mxu0 0.0
    %384 = vmatpush.msra.mxu0 0.0
    %385 = vmatpush.msra.mxu0 0.0
    %386 = vmatpush.msra.mxu0 0.0
    %387 = vmatpush.msra.mxu0 0.0
    %388 = vmatpush.msra.mxu0 0.0
    %389 = vmatpush.msra.mxu0 0.0
    %390 = vmatpush.msra.mxu0 %v339
    %391 = vmatpush.msra.mxu0 %v337
    %392 = vmatpush.msra.mxu0 %v335
    %393 = vmatpush.msra.mxu0 %v333
    %394 = vmatpush.msra.mxu0 %v331
    %395 = vmatpush.msra.mxu0 %v329
    %396 = vmatpush.msra.mxu0 %v327
    %397 = vmatpush.msra.mxu0 %v325
    %398 = vmatmul.f32.gmra.mxu0 %v371
    %v399 = vpop.f32.mrf.mxu0
    %v400 = vadd.f32 %v352, %v399
    %401 = vmatmul.f32.gmra.mxu0 %v374
    %v402 = vpop.f32.mrf.mxu0
    %v403 = vadd.f32 %v357, %v402
    %404 = vmatmul.f32.gmra.mxu0 %v377
    %v405 = vpop.f32.mrf.mxu0
    %v406 = vadd.f32 %v362, %v405
    %407 = vmatmul.f32.gmra.mxu0 %v380
    %v408 = vpop.f32.mrf.mxu0
    %v409 = vadd.f32 %v367, %v408
    %410 = vdwg.mxu0
    %411 = vmatpush.msra.mxu0 0.0
    %412 = vmatpush.msra.mxu0 0.0
    %413 = vmatpush.msra.mxu0 0.0
    %414 = vmatpush.msra.mxu0 0.0
    %415 = vmatpush.msra.mxu0 0.0
    %416 = vmatpush.msra.mxu0 0.0
    %417 = vmatpush.msra.mxu0 0.0
    %418 = vmatpush.msra.mxu0 0.0
    %419 = vmatpush.msra.mxu0 %v340
    %420 = vmatpush.msra.mxu0 %v338
    %421 = vmatpush.msra.mxu0 %v336
    %422 = vmatpush.msra.mxu0 %v334
    %423 = vmatpush.msra.mxu0 %v332
    %424 = vmatpush.msra.mxu0 %v330
    %425 = vmatpush.msra.mxu0 %v328
    %426 = vmatpush.msra.mxu0 %v326
    %427 = vmatmul.f32.gmra.mxu0 %v371
    %v428 = vpop.f32.mrf.mxu0
    %v429 = vadd.f32 %v352, %v428
    %430 = vmatmul.f32.gmra.mxu0 %v374
    %v431 = vpop.f32.mrf.mxu0
    %v432 = vadd.f32 %v357, %v431
    %433 = vmatmul.f32.gmra.mxu0 %v377
    %v434 = vpop.f32.mrf.mxu0
    %v435 = vadd.f32 %v362, %v434
    %436 = vmatmul.f32.gmra.mxu0 %v380
    %v437 = vpop.f32.mrf.mxu0
    %v438 = vadd.f32 %v367, %v437
    %439 = vdwg.mxu0
    %v440 = vmax.f32 %v400, 0.0
    %v441 = vmax.f32 %v429, 0.0
    %v442 = vmax.f32 %v403, 0.0
    %v443 = vmax.f32 %v432, 0.0
    %v444 = vmax.f32 %v406, 0.0
    %v445 = vmax.f32 %v435, 0.0
    %v446 = vmax.f32 %v409, 0.0
    %v447 = vmax.f32 %v438, 0.0
    %v448 = vld [vmem:[%s5] sm:$0xff]
    %v449 = vld [vmem:[%s5 + $0x8] sm:$0xff]
    %v450 = vld [vmem:[%s6] sm:$0xff]
    %v451 = vld [vmem:[%s6 + $0x8] sm:$0xff]
    %453 = vset.pattern.permute.xlu0 0
    %454 = vperm.xlu0 %453, %v450
    %v455 = vpop.permute.xlu0 %454
    %458 = vset.pattern.permute.xlu0 0
    %459 = vperm.xlu0 %458, %v451
    %v460 = vpop.permute.xlu0 %459
    %v463 = vsel %vm122, %v448, 0
    %v466 = vsel %vm122, %v449, 0
    %468 = vmatpush.msra.mxu0 0.0
    %469 = vmatpush.msra.mxu0 0.0
    %470 = vmatpush.msra.mxu0 0.0
    %471 = vmatpush.msra.mxu0 0.0
    %472 = vmatpush.msra.mxu0 0.0
    %473 = vmatpush.msra.mxu0 0.0
    %474 = vmatpush.msra.mxu0 0.0
    %475 = vmatpush.msra.mxu0 0.0
    %476 = vmatpush.msra.mxu0 0.0
    %477 = vmatpush.msra.mxu0 0.0
    %478 = vmatpush.msra.mxu0 0.0
    %479 = vmatpush.msra.mxu0 0.0
    %480 = vmatpush.msra.mxu0 %v446
    %481 = vmatpush.msra.mxu0 %v444
    %482 = vmatpush.msra.mxu0 %v442
    %483 = vmatpush.msra.mxu0 %v440
    %484 = vmatmul.f32.gmra.mxu0 %v463
    %v485 = vpop.f32.mrf.mxu0
    %v486 = vadd.f32 %v455, %v485
    %487 = vmatmul.f32.gmra.mxu0 %v466
    %v488 = vpop.f32.mrf.mxu0
    %v489 = vadd.f32 %v460, %v488
    %490 = vdwg.mxu0
    %491 = vmatpush.msra.mxu0 0.0
    %492 = vmatpush.msra.mxu0 0.0
    %493 = vmatpush.msra.mxu0 0.0
    %494 = vmatpush.msra.mxu0 0.0
    %495 = vmatpush.msra.mxu0 0.0
    %496 = vmatpush.msra.mxu0 0.0
    %497 = vmatpush.msra.mxu0 0.0
    %498 = vmatpush.msra.mxu0 0.0
    %499 = vmatpush.msra.mxu0 0.0
    %500 = vmatpush.msra.mxu0 0.0
    %501 = vmatpush.msra.mxu0 0.0
    %502 = vmatpush.msra.mxu0 0.0
    %503 = vmatpush.msra.mxu0 %v447
    %504 = vmatpush.msra.mxu0 %v445
    %505 = vmatpush.msra.mxu0 %v443
    %506 = vmatpush.msra.mxu0 %v441
    %507 = vmatmul.f32.gmra.mxu0 %v463
    %v508 = vpop.f32.mrf.mxu0
    %v509 = vadd.f32 %v455, %v508
    %510 = vmatmul.f32.gmra.mxu0 %v466
    %v511 = vpop.f32.mrf.mxu0
    %v512 = vadd.f32 %v460, %v511
    %513 = vdwg.mxu0
    %v514 = vmax.f32 %v486, 0.0
    %v515 = vmax.f32 %v509, 0.0
    %v516 = vmax.f32 %v489, 0.0
    %v517 = vmax.f32 %v512, 0.0
    %v518 = vld [vmem:[%s7] sm:$0x1]
    %s519 = sld [smem:[#allocation2]]
    %v520 = vstv %s519
    %vm521 = vcmask 130048
    %v523 = vsel %vm521, %v518, 0
    %525 = vmatpush.msra.mxu0 0.0
    %526 = vmatpush.msra.mxu0 0.0
    %527 = vmatpush.msra.mxu0 0.0
    %528 = vmatpush.msra.mxu0 0.0
    %529 = vmatpush.msra.mxu0 0.0
    %530 = vmatpush.msra.mxu0 0.0
    %531 = vmatpush.msra.mxu0 0.0
    %532 = vmatpush.msra.mxu0 0.0
    %533 = vmatpush.msra.mxu0 0.0
    %534 = vmatpush.msra.mxu0 0.0
    %535 = vmatpush.msra.mxu0 0.0
    %536 = vmatpush.msra.mxu0 0.0
    %537 = vmatpush.msra.mxu0 0.0
    %538 = vmatpush.msra.mxu0 0.0
    %539 = vmatpush.msra.mxu0 %v516
    %540 = vmatpush.msra.mxu0 %v514
    %541 = vmatmul.f32.gmra.mxu0 %v523
    %v542 = vpop.f32.mrf.mxu0
    %v543 = vadd.f32 %v520, %v542
    %544 = vdwg.mxu0
    %545 = vmatpush.msra.mxu0 0.0
    %546 = vmatpush.msra.mxu0 0.0
    %547 = vmatpush.msra.mxu0 0.0
    %548 = vmatpush.msra.mxu0 0.0
    %549 = vmatpush.msra.mxu0 0.0
    %550 = vmatpush.msra.mxu0 0.0
    %551 = vmatpush.msra.mxu0 0.0
    %552 = vmatpush.msra.mxu0 0.0
    %553 = vmatpush.msra.mxu0 0.0
    %554 = vmatpush.msra.mxu0 0.0
    %555 = vmatpush.msra.mxu0 0.0
    %556 = vmatpush.msra.mxu0 0.0
    %557 = vmatpush.msra.mxu0 0.0
    %558 = vmatpush.msra.mxu0 0.0
    %559 = vmatpush.msra.mxu0 %v517
    %560 = vmatpush.msra.mxu0 %v515
    %561 = vmatmul.f32.gmra.mxu0 %v523
    %v562 = vpop.f32.mrf.mxu0
    %v563 = vadd.f32 %v520, %v562
    %564 = vdwg.mxu0
    %v567 = vrot.slane %v563, 7
    %vm568 = vcmask 1040384
    %v569 = vsel %vm568, %v543, %v567
    %v571 = vlaneseq
    %vm572 = vcmp.ge.s32.totalorder %v571, 0
    %vm573 = vcmp.lt.s32.totalorder %v571, 256
    %vm574 = vmand %vm572, %vm573
    %575 = vst.msk [vmem:[#allocation3] sm:$0x3] %vm574, %v569
    // Predicated region
    $region38: #{tpu_custom_call.1} parent=1 // pred_check
      _
    $region39: #{tpu_custom_call.1} parent=1 // pred_check_branch
      %577 = sbr.rel (0) target = $region41
    $region40: #{tpu_custom_call.1} parent=1 // pred_region
      %579 = vsyncadd [#allocation4], 0
      %s581 = sshll.u32 [#allocation3], 4
      %s582 = int_to_ptr.vmem [resolvable:$true] %s581
      %s583 = sshll.u32 %s9, 4
      %s584 = int_to_ptr.hbm [resolvable:$true] %s583
      %586 = dma.vmem_to_hbm [thread:$0]  %s582, 32, %s584, [#allocation4]
    $region41: #{tpu_custom_call.1} parent=1 // pred_fallthru
      _
    // Predicated region
    $region42: #{tpu_custom_call.1} parent=1 // pred_check
      _
    $region43: #{tpu_custom_call.1} parent=1 // pred_check_branch
      %588 = sbr.rel (0) target = $region45
    $region44: #{tpu_custom_call.1} parent=1 // pred_region
      %590 = dma.done [#allocation4], 32
    $region45: #{tpu_custom_call.1} parent=1 // pred_fallthru
      _
    %591 = vsyncpa [#allocation4], 1

</llo_original>
